<compile_context>
chip_gen: v5e
topology: v5e:2x2
jax: 0.10.0
libtpu: 0.0.40
codegen_flags: <defaults>
</compile_context>

<pallas_src>
import math

import jax
import jax.numpy as jnp
from jax.experimental import pallas as pl
from jax.experimental.pallas import tpu as pltpu

_LANE = 128


def _round_up(x, m):
    return ((x + m - 1) // m) * m


def _sublane_multiple(dtype_bytes):
    # Native sublane tiling: (8,128) for 4B, (16,128) for 2B, (32,128) for 1B.
    return max(8, 32 // max(dtype_bytes, 1))


def _vmem_capacity_bytes():
    """Physical VMEM per TensorCore (128 MiB v5e/v6e, 64 MiB v7x)."""
    try:
        return int(pltpu.get_tpu_info().vmem_capacity_bytes)
    except Exception:  # pragma: no cover - older jax / non-TPU trace
        return 64 * 1024 * 1024  # conservative (v7x-sized) fallback


def _default_vmem_budget():
    # ~1/4 of physical VMEM for the double-buffered working set:
    # 32 MiB on v5e/v6e, 16 MiB on v7x.
    return max(_vmem_capacity_bytes() // 4, 8 * 1024 * 1024)


def _padded_row_bytes(widths, out_w, dtype_bytes):
    """Double-buffered VMEM bytes per row with every block lane-padded to 128."""
    padded_lanes = sum(_round_up(w, _LANE) for w in widths) + _round_up(out_w, _LANE)
    return 2 * dtype_bytes * padded_lanes


def _pick_tile_rows(rows, per_row_bytes, vmem_budget_bytes, sublane):
    """Largest row tile that (a) fits the padded double-buffered budget,
    (b) leaves >= ~8 grid steps so both v7x TCs and the pipeline get work,
    (c) is a multiple of the dtype-native sublane count."""
    budget_tile = vmem_budget_bytes // max(per_row_bytes, 1)
    target_tile = _round_up(pl.cdiv(rows, 8), sublane)   # aim for >= 8 steps
    tile = min(budget_tile, target_tile, 4096)
    tile = max(tile, sublane)
    if tile >= rows:
        return int(rows)  # full-extent block is always legal
    return int(max((tile // sublane) * sublane, sublane))


def _catter_kernel(*refs):
    """refs = (*in_refs, out_ref); each is a (TILE_R, W) VMEM tile.

    Stores are grouped so each write covers whole 128-lane output column
    groups where possible: one unmasked vst per group instead of several
    masked, lane-offset partial stores (store slot is the first to saturate
    for a copy-only kernel, especially on v5e).
    """
    *in_refs, out_ref = refs
    group = []
    group_start = 0
    offset = 0
    n = len(in_refs)
    for idx, r in enumerate(in_refs):
        w = r.shape[-1]
        group.append(r[...])
        offset += w
        if (offset % _LANE == 0) or (idx == n - 1):
            piece = group[0] if len(group) == 1 else jnp.concatenate(group, axis=-1)
            out_ref[:, group_start:offset] = piece
            group = []
            group_start = offset


def catter(xs, *, vmem_budget_bytes=None):
    """Concatenate a list/tuple of equal-rank arrays along the last axis."""
    xs = tuple(xs)
    assert len(xs) >= 1, "cat needs at least one tensor"
    lead = xs[0].shape[:-1]
    dtype = xs[0].dtype
    for x in xs:
        assert x.shape[:-1] == lead, "leading dims must match for cat(dim=-1)"
        assert x.dtype == dtype, "dtypes must match for cat(dim=-1)"

    # Zero-width inputs contribute nothing; drop them (keep one if all empty).
    nz = tuple(x for x in xs if x.shape[-1] > 0)
    xs = nz if nz else xs[:1]

    widths = [int(x.shape[-1]) for x in xs]
    out_w = sum(widths)
    rows = int(math.prod(lead)) if lead else 1
    out_shape = lead + (out_w,)

    # Degenerate shapes: let XLA handle them (avoids a 0-sized grid).
    if rows == 0 or out_w == 0:
        return jnp.concatenate(xs, axis=-1).reshape(out_shape)

    if vmem_budget_bytes is None:
        vmem_budget_bytes = _default_vmem_budget()

    dtype_bytes = jnp.dtype(dtype).itemsize
    sublane = _sublane_multiple(dtype_bytes)
    per_row = _padded_row_bytes(widths, out_w, dtype_bytes)
    tile_r = _pick_tile_rows(rows, per_row, vmem_budget_bytes, sublane)

    # Scoped-VMEM limit consistent with the padded, double-buffered footprint
    # plus ~25% headroom for Mosaic internal scratch.
    footprint = per_row * tile_r
    vmem_limit = int(footprint * 1.25) + (1 << 20)
    vmem_limit = max(4 << 20, min(vmem_limit, _vmem_capacity_bytes() // 2))

    # Collapse leading dims into one row axis (metadata-only reshape).
    xs2d = [x.reshape(rows, w) for x, w in zip(xs, widths)]
    grid = (pl.cdiv(rows, tile_r),)

    in_specs = [pl.BlockSpec((tile_r, w), lambda r: (r, 0)) for w in widths]
    out_spec = pl.BlockSpec((tile_r, out_w), lambda r: (r, 0))

    total_bytes = sum(x.size * dtype_bytes for x in xs2d)
    cost = pl.CostEstimate(
        flops=0, transcendentals=0, bytes_accessed=2 * total_bytes
    )

    out2d = pl.pallas_call(
        _catter_kernel,
        out_shape=jax.ShapeDtypeStruct((rows, out_w), dtype),
        grid=grid,
        in_specs=in_specs,
        out_specs=out_spec,
        compiler_params=pltpu.CompilerParams(
            dimension_semantics=("parallel",),
            vmem_limit_bytes=vmem_limit,
        ),
        cost_estimate=cost,
    )(*xs2d)

    return out2d.reshape(out_shape)


if __name__ == "__main__":
    key = jax.random.PRNGKey(0)
    k1, k2, k3 = jax.random.split(key, 3)

    # Small NCHW-style inputs with differing last-dim widths.
    x1 = jax.random.normal(k1, (2, 4, 16, 16), dtype=jnp.float32)
    x2 = jax.random.normal(k2, (2, 4, 16, 8), dtype=jnp.float32)
    x3 = jax.random.normal(k3, (2, 4, 16, 24), dtype=jnp.float32)
    xs = [x1, x2, x3]
    ref = jnp.concatenate(xs, axis=-1)

    # 1) Default path (generation-aware budget; row-tiled multi-step grid).
    out = jax.block_until_ready(catter(xs))
    assert out.shape == ref.shape, (out.shape, ref.shape)
    assert out.dtype == ref.dtype
    assert jnp.array_equal(out, ref), "Pallas catter mismatch vs jnp.concatenate"

    # 2) Tiny VMEM budget to exercise the budget-limited tiling path.
    out_tiled = jax.block_until_ready(catter(xs, vmem_budget_bytes=64 * 1024))
    assert jnp.array_equal(out_tiled, ref), "tiled Pallas catter mismatch"

    # 3) bf16 exercises the dtype-native (16, 128) sublane rounding.
    xb = [x.astype(jnp.bfloat16) for x in xs]
    refb = jnp.concatenate(xb, axis=-1)
    outb = jax.block_until_ready(catter(xb))
    assert outb.dtype == refb.dtype
    assert jnp.array_equal(outb, refb), "bf16 Pallas catter mismatch"

    print("KERNEL_OK")
</pallas_src>

<mosaic_0001>
module attributes {stable_mosaic.version = 11 : i64} {
  func.func @_catter_kernel(%arg0: i32, %arg1: memref<16x16xf32, #tpu.memory_space<vmem>>, %arg2: memref<16x8xf32, #tpu.memory_space<vmem>>, %arg3: memref<16x24xf32, #tpu.memory_space<vmem>>, %arg4: memref<16x48xf32, #tpu.memory_space<vmem>>) attributes {dimension_semantics = [#tpu.dimension_semantics<parallel>], iteration_bounds = array<i64: 8>, scalar_prefetch = 0 : i64, scratch_operands = 0 : i64, tpu.core_type = #tpu.core_type<tc>, window_params = [{transform_indices = @transform_0, window_bounds = array<i64: 16, 16>}, {transform_indices = @transform_1, window_bounds = array<i64: 16, 8>}, {transform_indices = @transform_2, window_bounds = array<i64: 16, 24>}, {transform_indices = @transform_3, window_bounds = array<i64: 16, 48>}]} {
    %c0 = arith.constant 0 : index
    %c0_0 = arith.constant 0 : index
    %0 = vector.load %arg1[%c0, %c0_0] : memref<16x16xf32, #tpu.memory_space<vmem>>, vector<16x16xf32>
    %c0_1 = arith.constant 0 : index
    %c0_2 = arith.constant 0 : index
    %1 = vector.load %arg2[%c0_1, %c0_2] : memref<16x8xf32, #tpu.memory_space<vmem>>, vector<16x8xf32>
    %c0_3 = arith.constant 0 : index
    %c0_4 = arith.constant 0 : index
    %2 = vector.load %arg3[%c0_3, %c0_4] : memref<16x24xf32, #tpu.memory_space<vmem>>, vector<16x24xf32>
    %3 = tpu.concatenate %0, %1, %2 in 1 : vector<16x16xf32>, vector<16x8xf32>, vector<16x24xf32> -> vector<16x48xf32>
    %c0_5 = arith.constant 0 : index
    %c0_6 = arith.constant 0 : index
    %4 = vector.load %arg4[%c0_5, %c0_6] : memref<16x48xf32, #tpu.memory_space<vmem>>, vector<16x48xf32>
    tpu.vector_store %arg4[%c0_5, %c0_6], %3 {strides = array<i32>} : memref<16x48xf32, #tpu.memory_space<vmem>>, vector<16x48xf32>,
    return
  }
  func.func @transform_0(%arg0: i32) -> (i32, i32) {
    %c0_i32 = arith.constant 0 : i32
    %c0_i32_0 = arith.constant 0 : i32
    return %arg0, %c0_i32 : i32, i32
  }
  func.func @transform_1(%arg0: i32) -> (i32, i32) {
    %c0_i32 = arith.constant 0 : i32
    %c0_i32_0 = arith.constant 0 : i32
    return %arg0, %c0_i32 : i32, i32
  }
  func.func @transform_2(%arg0: i32) -> (i32, i32) {
    %c0_i32 = arith.constant 0 : i32
    %c0_i32_0 = arith.constant 0 : i32
    return %arg0, %c0_i32 : i32, i32
  }
  func.func @transform_3(%arg0: i32) -> (i32, i32) {
    %c0_i32 = arith.constant 0 : i32
    %c0_i32_0 = arith.constant 0 : i32
    return %arg0, %c0_i32 : i32, i32
  }
}

</mosaic_0001>

<llo_original>
// kernel: tpu_custom_call.1
$region0: #{tpu_custom_call.1}
  #allocation0 [shape = 'u32[]', space=smem, size = 0x4, offset = 0x4, fixed_abs, tag = 'smem constant byte address 0x4 - core index']
  #allocation1 [shape = 'u32[72,128]{1,0:T(1,128)}', space=vmem, size = 0x9000, scoped, tag = 'internal scratch']
  %s0 = inlined_call_operand.vmem [shape: f32[128,16], index: 0, kind: input, shape index: {}]
  %s1 = inlined_call_operand.vmem [shape: f32[128,8], index: 1, kind: input, shape index: {}]
  %s2 = inlined_call_operand.vmem [shape: f32[128,24], index: 2, kind: input, shape index: {}]
  %s3 = inlined_call_operand.vmem [shape: f32[128,48], index: 3, kind: output, shape index: {}]
  %s4 = sld [smem:[#allocation0]]
  $region45: #{tpu_custom_call.1} parent=0
    _
  %s6 = ssub.s32 1, %s4
  %s7 = scalar_select 0, %s6, %s4
  loop: start=0, step=1, limit=10
  $region2: #{tpu_custom_call.1} parent=0 // loop_pre_header
    _
  $region3: #{tpu_custom_call.1} parent=0 // loop_header
    %s9 = sphi 0, %s13
    %p10 = scmp.ge.s32.totalorder %s9, 10
    %s19 = sphi 0, %s21
    %s22 = sphi 0, %s19
    %s23 = sphi 0, %s22
    %s39 = sphi 0, %s23
    %s45 = sphi 0, %s47
    %s48 = sphi 0, %s45
    %s49 = sphi 0, %s48
    %s65 = sphi 0, %s49
    %s71 = sphi 0, %s73
    %s74 = sphi 0, %s71
    %s75 = sphi 0, %s74
    %s91 = sphi 0, %s75
    %s97 = sphi 0, %s99
    %s100 = sphi 0, %s97
    %s101 = sphi 0, %s100
    %s117 = sphi 0, %s101
  $region4: #{tpu_custom_call.1} parent=0 // loop_header_branch
    %12 = sbr.rel (%p10) target = $region8
  $region5: #{tpu_custom_call.1} parent=0 // loop_body
    %s14 = ssub.s32 %s9, 1
    %s15 = ssub.s32 %s9, 2
    %s16 = sadd.s32 %s9, 1
    %s17 = ssub.s32 %s9, %s16
    %p18 = scmp.eq.s32.totalorder %s17, 0
    %s20 = sadd.s32 %s19, 1
    %s21 = scalar_select %p18, %s19, %s20
    %p24 = pneg %p18
    %p25 = scmp.eq.s32.totalorder %s9, 7
    %p26 = por %p24, %p25
    %p27 = scmp.ne.s32.totalorder %s19, %s22
    %p28 = scmp.eq.s32.totalorder %s9, 0
    %p29 = por %p27, %p28
    %p30 = scmp.ne.s32.totalorder %s19, %s22
    %p31 = scmp.eq.s32.totalorder %s14, 7
    %p32 = por %p30, %p31
    %p33 = scmp.ne.s32.totalorder %s22, %s23
    %p34 = scmp.eq.s32.totalorder %s14, 0
    %p35 = por %p33, %p34
    %p36 = scmp.ne.s32.totalorder %s22, %s23
    %p37 = scmp.eq.s32.totalorder %s15, 7
    %p38 = por %p36, %p37
    %p40 = scmp.ne.s32.totalorder %s23, %s39
    %p41 = scmp.eq.s32.totalorder %s15, 0
    %p42 = por %p40, %p41
    %s43 = ssub.s32 %s9, %s16
    %p44 = scmp.eq.s32.totalorder %s43, 0
    %s46 = sadd.s32 %s45, 1
    %s47 = scalar_select %p44, %s45, %s46
    %p50 = pneg %p44
    %p51 = scmp.eq.s32.totalorder %s9, 7
    %p52 = por %p50, %p51
    %p53 = scmp.ne.s32.totalorder %s45, %s48
    %p54 = scmp.eq.s32.totalorder %s9, 0
    %p55 = por %p53, %p54
    %p56 = scmp.ne.s32.totalorder %s45, %s48
    %p57 = scmp.eq.s32.totalorder %s14, 7
    %p58 = por %p56, %p57
    %p59 = scmp.ne.s32.totalorder %s48, %s49
    %p60 = scmp.eq.s32.totalorder %s14, 0
    %p61 = por %p59, %p60
    %p62 = scmp.ne.s32.totalorder %s48, %s49
    %p63 = scmp.eq.s32.totalorder %s15, 7
    %p64 = por %p62, %p63
    %p66 = scmp.ne.s32.totalorder %s49, %s65
    %p67 = scmp.eq.s32.totalorder %s15, 0
    %p68 = por %p66, %p67
    %s69 = ssub.s32 %s9, %s16
    %p70 = scmp.eq.s32.totalorder %s69, 0
    %s72 = sadd.s32 %s71, 1
    %s73 = scalar_select %p70, %s71, %s72
    %p76 = pneg %p70
    %p77 = scmp.eq.s32.totalorder %s9, 7
    %p78 = por %p76, %p77
    %p79 = scmp.ne.s32.totalorder %s71, %s74
    %p80 = scmp.eq.s32.totalorder %s9, 0
    %p81 = por %p79, %p80
    %p82 = scmp.ne.s32.totalorder %s71, %s74
    %p83 = scmp.eq.s32.totalorder %s14, 7
    %p84 = por %p82, %p83
    %p85 = scmp.ne.s32.totalorder %s74, %s75
    %p86 = scmp.eq.s32.totalorder %s14, 0
    %p87 = por %p85, %p86
    %p88 = scmp.ne.s32.totalorder %s74, %s75
    %p89 = scmp.eq.s32.totalorder %s15, 7
    %p90 = por %p88, %p89
    %p92 = scmp.ne.s32.totalorder %s75, %s91
    %p93 = scmp.eq.s32.totalorder %s15, 0
    %p94 = por %p92, %p93
    %s95 = ssub.s32 %s9, %s16
    %p96 = scmp.eq.s32.totalorder %s95, 0
    %s98 = sadd.s32 %s97, 1
    %s99 = scalar_select %p96, %s97, %s98
    %p102 = pneg %p96
    %p103 = scmp.eq.s32.totalorder %s9, 7
    %p104 = por %p102, %p103
    %p105 = scmp.ne.s32.totalorder %s97, %s100
    %p106 = scmp.eq.s32.totalorder %s9, 0
    %p107 = por %p105, %p106
    %p108 = scmp.ne.s32.totalorder %s97, %s100
    %p109 = scmp.eq.s32.totalorder %s14, 7
    %p110 = por %p108, %p109
    %p111 = scmp.ne.s32.totalorder %s100, %s101
    %p112 = scmp.eq.s32.totalorder %s14, 0
    %p113 = por %p111, %p112
    %p114 = scmp.ne.s32.totalorder %s100, %s101
    %p115 = scmp.eq.s32.totalorder %s15, 7
    %p116 = por %p114, %p115
    %p118 = scmp.ne.s32.totalorder %s101, %s117
    %p119 = scmp.eq.s32.totalorder %s15, 0
    %p120 = por %p118, %p119
    %p121 = scmp.le.s32.totalorder 1, %s9
    %p122 = scmp.lt.s32.totalorder %s9, 9
    %p123 = pnand %p121, %p122
    %p124 = pneg %p123
    // Predicated region
    $region9: #{tpu_custom_call.1} parent=5 // pred_check
      _
    $region10: #{tpu_custom_call.1} parent=5 // pred_check_branch
      %126 = sbr.rel (%p123) target = $region12
    $region11: #{tpu_custom_call.1} parent=5 // pred_region
      %s127 = ssub.s32 %s9, 1
    $region12: #{tpu_custom_call.1} parent=5 // pred_fallthru
      _
    %p128 = scmp.lt.s32.totalorder %s9, 8
    // Predicated region
    $region13: #{tpu_custom_call.1} parent=5 // pred_check
      %p129 = pneg %p128
    $region14: #{tpu_custom_call.1} parent=5 // pred_check_branch
      %131 = sbr.rel (%p129) target = $region16
    $region15: #{tpu_custom_call.1} parent=5 // pred_region
      // Predicated region
      $region17: #{tpu_custom_call.1} parent=15 // pred_check
        %p132 = pneg %p29
      $region18: #{tpu_custom_call.1} parent=15 // pred_check_branch
        %134 = sbr.rel (%p132) target = $region20
      $region19: #{tpu_custom_call.1} parent=15 // pred_region
        %s135 = smul.u32 2, %s9
        %p136 = scmp.lt.s32.totalorder %s135, 15
        %s137 = scalar_select %p136, %s135, 15
        %s138 = smul.addr %s137, 8
        %s139 = scalar_lea.vmem %s0, %s138
        %s140 = smul.u32 2, %s9
      $region20: #{tpu_custom_call.1} parent=15 // pred_fallthru
        _
      // Predicated region
      $region21: #{tpu_custom_call.1} parent=15 // pred_check
        %p141 = pneg %p55
      $region22: #{tpu_custom_call.1} parent=15 // pred_check_branch
        %143 = sbr.rel (%p141) target = $region24
      $region23: #{tpu_custom_call.1} parent=15 // pred_region
        %s144 = smul.u32 2, %s9
        %p145 = scmp.lt.s32.totalorder %s144, 15
        %s146 = scalar_select %p145, %s144, 15
        %s147 = smul.addr %s146, 8
        %s148 = scalar_lea.vmem %s1, %s147
        %s149 = smul.u32 2, %s9
      $region24: #{tpu_custom_call.1} parent=15 // pred_fallthru
        _
      // Predicated region
      $region25: #{tpu_custom_call.1} parent=15 // pred_check
        %p150 = pneg %p81
      $region26: #{tpu_custom_call.1} parent=15 // pred_check_branch
        %152 = sbr.rel (%p150) target = $region28
      $region27: #{tpu_custom_call.1} parent=15 // pred_region
        %s153 = smul.u32 2, %s9
        %p154 = scmp.lt.s32.totalorder %s153, 15
        %s155 = scalar_select %p154, %s153, 15
        %s156 = smul.addr %s155, 8
        %s157 = scalar_lea.vmem %s2, %s156
        %s158 = smul.u32 2, %s9
      $region28: #{tpu_custom_call.1} parent=15 // pred_fallthru
        _
    $region16: #{tpu_custom_call.1} parent=5 // pred_fallthru
      _
    %p159 = scmp.le.s32.totalorder 1, %s9
    %p160 = scmp.lt.s32.totalorder %s9, 9
    %p161 = pnand %p159, %p160
    %p162 = pneg %p161
    // Predicated region
    $region29: #{tpu_custom_call.1} parent=5 // pred_check
      _
    $region30: #{tpu_custom_call.1} parent=5 // pred_check_branch
      %164 = sbr.rel (%p161) target = $region32
    $region31: #{tpu_custom_call.1} parent=5 // pred_region
      %s165 = ssub.s32 %s9, 1
      %s166 = smul.u32 2, %s14
      %p167 = scmp.lt.s32.totalorder %s166, 15
      %s168 = scalar_select %p167, %s166, 15
      %s169 = smul.addr %s168, 8
      %s170 = scalar_lea.vmem %s0, %s169
      %p171 = pneg %p35
      %p172 = pneg %p32
      %s173 = smul.u32 2, %s14
      %p174 = scmp.lt.s32.totalorder %s173, 15
      %s175 = scalar_select %p174, %s173, 15
      %s176 = smul.addr %s175, 8
      %s177 = scalar_lea.vmem %s1, %s176
      %p178 = pneg %p61
      %p179 = pneg %p58
      %s180 = smul.u32 2, %s14
      %p181 = scmp.lt.s32.totalorder %s180, 15
      %s182 = scalar_select %p181, %s180, 15
      %s183 = smul.addr %s182, 8
      %s184 = scalar_lea.vmem %s2, %s183
      %p185 = pneg %p87
      %p186 = pneg %p84
      %p187 = pneg %p113
      %p188 = pneg %p110
      %s189 = smul.u32 2, %s14
      %p190 = scmp.lt.s32.totalorder %s189, 15
      %s191 = scalar_select %p190, %s189, 15
      %s192 = smul.addr %s191, 8
      %s193 = scalar_lea.vmem %s3, %s192
      %s194 = smul.u32 2, %s14
      %p195 = scmp.lt.s32.totalorder %s194, 15
      %s196 = scalar_select %p195, %s194, 15
      %s197 = smul.addr %s196, 8
      %s198 = scalar_lea.vmem %s0, %s197
      %s199 = smul.u32 2, %s14
      %s200 = smul.u32 2, %s14
      %p201 = scmp.lt.s32.totalorder %s200, 15
      %s202 = scalar_select %p201, %s200, 15
      %s203 = smul.addr %s202, 8
      %s204 = scalar_lea.vmem %s1, %s203
      %s205 = smul.u32 2, %s14
      %s206 = smul.u32 2, %s14
      %p207 = scmp.lt.s32.totalorder %s206, 15
      %s208 = scalar_select %p207, %s206, 15
      %s209 = smul.addr %s208, 8
      %s210 = scalar_lea.vmem %s2, %s209
      %s211 = smul.u32 2, %s14
      %s212 = smul.u32 2, %s14
      %p213 = scmp.lt.s32.totalorder %s212, 15
      %s214 = scalar_select %p213, %s212, 15
      %s215 = smul.addr %s214, 8
      %s216 = scalar_lea.vmem %s3, %s215
      %s217 = smul.u32 2, %s14
      %v218 = vld [vmem:[%s198] sm:$0xff]
      %v219 = vld [vmem:[%s198 + $0x8] sm:$0xff]
      %v220 = vld [vmem:[%s204] sm:$0xff]
      %v221 = vld [vmem:[%s204 + $0x8] sm:$0xff]
      %v222 = vld [vmem:[%s210] sm:$0xff]
      %v223 = vld [vmem:[%s210 + $0x8] sm:$0xff]
      %226 = vrot.lane.b32.xlu0 %v220, 16
      %v227 = vpop.permute.xlu0 %226
      %228 = vrot.lane.b32.xlu0 %v221, 16
      %v229 = vpop.permute.xlu0 %228
      %234 = vrot.lane.b32.xlu0 %v222, 24
      %v235 = vpop.permute.xlu0 %234
      %236 = vrot.lane.b32.xlu0 %v223, 24
      %v237 = vpop.permute.xlu0 %236
      %vm240 = vcmask 130048
      %v241 = vsel %vm240, %v218, %v227
      %v242 = vsel %vm240, %v219, %v229
      %vm243 = vcmask 195584
      %v244 = vsel %vm243, %v241, %v235
      %v245 = vsel %vm243, %v242, %v237
      %vm246 = vcmask 392192
      %247 = vst.msk [vmem:[%s216] sm:$0xff] %vm246, %v244
      %248 = vst.msk [vmem:[%s216 + $0x8] sm:$0xff] %vm246, %v245
      %s249 = smul.u32 2, %s14
      %p250 = scmp.lt.s32.totalorder %s249, 15
      %s251 = scalar_select %p250, %s249, 15
      %s252 = smul.addr %s251, 8
      %s253 = scalar_lea.vmem %s3, %s252
      // Predicated region
      $region33: #{tpu_custom_call.1} parent=31 // pred_check
        %p254 = pneg %p110
      $region34: #{tpu_custom_call.1} parent=31 // pred_check_branch
        %256 = sbr.rel (%p254) target = $region36
      $region35: #{tpu_custom_call.1} parent=31 // pred_region
        %s257 = smul.u32 2, %s14
      $region36: #{tpu_custom_call.1} parent=31 // pred_fallthru
        _
    $region32: #{tpu_custom_call.1} parent=5 // pred_fallthru
      _
    %p258 = scmp.le.s32.totalorder 2, %s9
    // Predicated region
    $region37: #{tpu_custom_call.1} parent=5 // pred_check
      %p259 = pneg %p258
    $region38: #{tpu_custom_call.1} parent=5 // pred_check_branch
      %261 = sbr.rel (%p259) target = $region40
    $region39: #{tpu_custom_call.1} parent=5 // pred_region
      %s262 = ssub.s32 %s9, 2
      // Predicated region
      $region41: #{tpu_custom_call.1} parent=39 // pred_check
        %p263 = pneg %p116
      $region42: #{tpu_custom_call.1} parent=39 // pred_check_branch
        %265 = sbr.rel (%p263) target = $region44
      $region43: #{tpu_custom_call.1} parent=39 // pred_region
        %s266 = smul.u32 2, %s15
        %p267 = scmp.lt.s32.totalorder %s266, 15
        %s268 = scalar_select %p267, %s266, 15
        %s269 = smul.addr %s268, 8
        %s270 = scalar_lea.vmem %s3, %s269
      $region44: #{tpu_custom_call.1} parent=39 // pred_fallthru
        _
    $region40: #{tpu_custom_call.1} parent=5 // pred_fallthru
      _
  $region6: #{tpu_custom_call.1} parent=0 // loop_footer
    %s13 = sadd.s32 1, %s9
  $region7: #{tpu_custom_call.1} parent=0 // loop_footer_branch
    %8 = sbr.rel target = $region3
  $region8: #{tpu_custom_call.1} parent=0 // loop_exit
    _

</llo_original>
